<compile_context>
chip_gen: v7x
topology: tpu7x:2x2x1
jax: 0.10.0
libtpu: 0.0.40
codegen_flags: <defaults>
</compile_context>

<pallas_src>
import functools

import jax
import jax.numpy as jnp
from jax.experimental import pallas as pl
from jax.experimental.pallas import tpu as pltpu


_BLOCK_BUDGET_BYTES = 6 * 1024 * 1024   # per x/out block (review: 4-8 MiB)


# --------------------------------------------------------------------------
# Excitation MLP (shared by both kernels): Linear -> ReLU -> Linear -> Sigmoid
# --------------------------------------------------------------------------
def _excite_mlp(squeeze, w1t, b1, w2t, b2, use_mxu):
    """squeeze: (NB, C) f32.  Returns sigmoid(...) as (NB, C) f32."""
    b1 = b1.astype(jnp.float32)
    b2 = b2.astype(jnp.float32)
    if use_mxu:
        # MXU path for realistic channel counts (weights may be bf16; f32 acc).
        h = jnp.dot(squeeze.astype(w1t.dtype), w1t,
                    preferred_element_type=jnp.float32) + b1
        h = jnp.maximum(h, 0.0)
        e = jnp.dot(h.astype(w2t.dtype), w2t,
                    preferred_element_type=jnp.float32) + b2
    else:
        # VPU broadcast+reduce path for tiny C (avoids a degenerate matmul).
        w1f = w1t.astype(jnp.float32)
        w2f = w2t.astype(jnp.float32)
        h = jnp.sum(squeeze[:, :, None] * w1f[None, :, :], axis=1) + b1
        h = jnp.maximum(h, 0.0)
        e = jnp.sum(h[:, :, None] * w2f[None, :, :], axis=1) + b2
    return jax.nn.sigmoid(e)


# --------------------------------------------------------------------------
# Main kernel: one fused pass over a (NB, C, HW) or (NB, HW, C) block.
# --------------------------------------------------------------------------
def se_kernel(x_ref, w1t_ref, b1_ref, w2t_ref, b2_ref, o_ref, *,
              inv_hw, use_mxu, channels_last):
    x = x_ref[...]                                  # input dtype, no f32 copy
    spatial_axis = 1 if channels_last else 2
    # Squeeze: global average pool with f32 accumulation.
    squeeze = jnp.sum(x, axis=spatial_axis, dtype=jnp.float32) * inv_hw  # (NB, C)
    excite = _excite_mlp(squeeze, w1t_ref[...], b1_ref[...],
                         w2t_ref[...], b2_ref[...], use_mxu)             # (NB, C)
    e = excite.astype(x.dtype)
    # Per-channel scale in the input dtype; single store of the block.
    if channels_last:
        o_ref[...] = (x * e[:, None, :]).astype(o_ref.dtype)
    else:
        o_ref[...] = (x * e[:, :, None]).astype(o_ref.dtype)


# --------------------------------------------------------------------------
# Fallback kernel: per-batch slab too large for one block -> tile over HW
# with a two-pass grid axis (pass 0: squeeze+excite, pass 1: scale).
# Only used for channels-first layout with HW > 128.
# --------------------------------------------------------------------------
def se_kernel_hw_tiled(x_ref, w1t_ref, b1_ref, w2t_ref, b2_ref, o_ref,
                       sum_ref, exc_ref, *, inv_hw, hw_total, hw_tile, use_mxu):
    p = pl.program_id(1)           # 0 = squeeze pass, 1 = scale pass
    hw = pl.program_id(2)
    n_hw = pl.num_programs(2)

    @pl.when(p == 0)
    def _squeeze_pass():
        @pl.when(hw == 0)
        def _():
            sum_ref[...] = jnp.zeros_like(sum_ref)

        x = x_ref[...]
        # Mask the padded tail of the last spatial tile so it does not pollute
        # the mean.
        lane = jax.lax.broadcasted_iota(jnp.int32, x.shape, dimension=2)
        valid = (hw * hw_tile + lane) < hw_total
        part = jnp.where(valid, x.astype(jnp.float32), 0.0)
        sum_ref[...] += jnp.sum(part, axis=2)

        @pl.when(hw == n_hw - 1)
        def _():
            squeeze = sum_ref[...] * inv_hw
            exc_ref[...] = _excite_mlp(squeeze, w1t_ref[...], b1_ref[...],
                                       w2t_ref[...], b2_ref[...], use_mxu)

    @pl.when(p == 1)
    def _scale_pass():
        e = exc_ref[...].astype(o_ref.dtype)
        o_ref[...] = (x_ref[...] * e[:, :, None]).astype(o_ref.dtype)


# --------------------------------------------------------------------------
# Tiling / VMEM helpers
# --------------------------------------------------------------------------
def _pick_batch_tile(n, per_batch_bytes, budget_bytes):
    """Batch-tile size NB.  Not constrained to divide n (grid uses cdiv)."""
    cap = max(1, budget_bytes // max(1, per_batch_bytes))
    nb = min(n, cap)
    if n >= 2:
        # Keep >=2 (target >=4) grid steps so both v7x TensorCores get work
        # and DMA/compute can pipeline; padded tail rows are safe (per-row
        # reduction, clipped writeback).
        nb = min(nb, max(1, pl.cdiv(n, 4)))
    return nb


def _vmem_limit_bytes(block_bytes, weight_bytes):
    # x-in and out are each double-buffered; weights/biases are resident
    # (constant index map) but still double-buffered once.  Clamp to 32..48 MiB
    # which is safe on v5e/v6e (128 MiB physical VMEM) and v7x (64 MiB).
    need = 4 * block_bytes + 2 * weight_bytes + (4 << 20)
    return int(min(max(need, 32 << 20), 48 << 20))


# --------------------------------------------------------------------------
# Wrapper
# --------------------------------------------------------------------------
def se_forward(x, w1, b1, w2, b2, *, channels_last=False,
               block_budget_bytes=_BLOCK_BUDGET_BYTES):
    """SEBlock forward.

    x : (N, C, H, W) if channels_last=False (PyTorch NCHW), else (N, H, W, C).
    w1: (Cr, C), b1: (Cr,), w2: (C, Cr), b2: (C,)   (nn.Linear layouts).
    """
    if channels_last:
        N, H, W, C = x.shape
    else:
        N, C, H, W = x.shape
    Cr = w1.shape[0]
    HW = H * W
    itemsize = x.dtype.itemsize

    # Weights stay in the input dtype for sub-32-bit inputs (bf16 MXU, f32
    # accumulation); biases stay f32 (tiny).
    param_dtype = x.dtype if itemsize < 4 else jnp.float32
    w1t = jnp.asarray(w1).astype(param_dtype).T            # (C, Cr)
    b1r = jnp.asarray(b1, jnp.float32).reshape(1, Cr)      # (1, Cr)
    w2t = jnp.asarray(w2).astype(param_dtype).T            # (Cr, C)
    b2r = jnp.asarray(b2, jnp.float32).reshape(1, C)       # (1, C)
    weight_bytes = ((w1t.size + w2t.size) * jnp.dtype(param_dtype).itemsize
                    + (b1r.size + b2r.size) * 4)

    # Free, contiguous collapse of the spatial dims.
    x3 = x.reshape(N, HW, C) if channels_last else x.reshape(N, C, HW)

    use_mxu = C >= 128
    per_batch_bytes = C * HW * itemsize

    if (not channels_last) and per_batch_bytes > block_budget_bytes and HW > 128:
        # VMEM guard: per-batch slab too big for one block (matters on v7x's
        # 64 MiB VMEM) -> two-pass HW-tiled fallback, NB = 1.
        hwt = (block_budget_bytes // (C * itemsize)) // 128 * 128
        hwt = max(128, min(hwt, HW))
        n_hw = pl.cdiv(HW, hwt)
        kernel = functools.partial(se_kernel_hw_tiled, inv_hw=1.0 / HW,
                                   hw_total=HW, hw_tile=hwt, use_mxu=use_mxu)
        out3 = pl.pallas_call(
            kernel,
            out_shape=jax.ShapeDtypeStruct(x3.shape, x.dtype),
            grid_spec=pltpu.PrefetchScalarGridSpec(
                num_scalar_prefetch=0,
                grid=(N, 2, n_hw),
                in_specs=[
                    pl.BlockSpec((1, C, hwt), lambda b, p, hw: (b, 0, hw)),
                    pl.BlockSpec((C, Cr), lambda b, p, hw: (0, 0)),
                    pl.BlockSpec((1, Cr), lambda b, p, hw: (0, 0)),
                    pl.BlockSpec((Cr, C), lambda b, p, hw: (0, 0)),
                    pl.BlockSpec((1, C), lambda b, p, hw: (0, 0)),
                ],
                # During the squeeze pass the output block index stays pinned
                # at (b, 0, 0); the block is only actually written (and later
                # flushed) once the scale pass has filled it with real data.
                out_specs=pl.BlockSpec((1, C, hwt),
                                       lambda b, p, hw: (b, 0, p * hw)),
                scratch_shapes=[pltpu.VMEM((1, C), jnp.float32),   # squeeze sum
                                pltpu.VMEM((1, C), jnp.float32)],  # excitation
            ),
            compiler_params=pltpu.CompilerParams(
                dimension_semantics=("parallel", "arbitrary", "arbitrary"),
                vmem_limit_bytes=_vmem_limit_bytes(C * hwt * itemsize,
                                                   weight_bytes)),
        )(x3, w1t, b1r, w2t, b2r)
    else:
        # TODO(synk): channels-last inputs whose per-batch slab exceeds the
        # block budget fall through to a single big block (no HW tiling here).
        NB = _pick_batch_tile(N, per_batch_bytes, block_budget_bytes)
        block = (NB,) + x3.shape[1:]
        kernel = functools.partial(se_kernel, inv_hw=1.0 / HW,
                                   use_mxu=use_mxu, channels_last=channels_last)
        out3 = pl.pallas_call(
            kernel,
            out_shape=jax.ShapeDtypeStruct(x3.shape, x.dtype),
            grid_spec=pltpu.PrefetchScalarGridSpec(
                num_scalar_prefetch=0,
                grid=(pl.cdiv(N, NB),),
                in_specs=[
                    pl.BlockSpec(block, lambda b: (b, 0, 0)),       # x
                    pl.BlockSpec((C, Cr), lambda b: (0, 0)),        # w1^T
                    pl.BlockSpec((1, Cr), lambda b: (0, 0)),        # b1
                    pl.BlockSpec((Cr, C), lambda b: (0, 0)),        # w2^T
                    pl.BlockSpec((1, C), lambda b: (0, 0)),         # b2
                ],
                out_specs=pl.BlockSpec(block, lambda b: (b, 0, 0)),
            ),
            compiler_params=pltpu.CompilerParams(
                dimension_semantics=("parallel",),
                vmem_limit_bytes=_vmem_limit_bytes(NB * per_batch_bytes,
                                                   weight_bytes)),
        )(x3, w1t, b1r, w2t, b2r)

    return out3.reshape(x.shape)


# --------------------------------------------------------------------------
# Pure-JAX reference mirroring the PyTorch SEBlock forward.
# --------------------------------------------------------------------------
def se_reference(x, w1, b1, w2, b2, channels_last=False):
    axes = (1, 2) if channels_last else (2, 3)
    squeeze = jnp.mean(x.astype(jnp.float32), axis=axes)      # (N, C)
    h = jax.nn.relu(squeeze @ w1.T + b1)
    e = jax.nn.sigmoid(h @ w2.T + b2)
    e = e[:, None, None, :] if channels_last else e[:, :, None, None]
    return (x.astype(jnp.float32) * e).astype(x.dtype)


if __name__ == "__main__":
    def _run_case(name, n, c, h, w, *, reduction_ratio=16, channels_last=False,
                  block_budget_bytes=None, atol=1e-4):
        cr = max(1, c // reduction_ratio)
        kx, k1, k2, k3, k4 = jax.random.split(jax.random.PRNGKey(0), 5)
        shape = (n, h, w, c) if channels_last else (n, c, h, w)
        x = jax.random.normal(kx, shape, dtype=jnp.float32)
        w1 = 0.5 * jax.random.normal(k1, (cr, c), dtype=jnp.float32)
        b1 = 0.1 * jax.random.normal(k2, (cr,), dtype=jnp.float32)
        b2 = 0.1 * jax.random.normal(k4, (c,), dtype=jnp.float32)
        w2 = 0.5 * jax.random.normal(k3, (c, cr), dtype=jnp.float32)

        kwargs = dict(channels_last=channels_last)
        if block_budget_bytes is not None:
            kwargs["block_budget_bytes"] = block_budget_bytes
        out = jax.block_until_ready(se_forward(x, w1, b1, w2, b2, **kwargs))
        ref = se_reference(x, w1, b1, w2, b2, channels_last=channels_last)
        assert out.shape == shape, f"{name}: bad output shape {out.shape}"
        err = float(jnp.max(jnp.abs(out - ref)))
        assert err < atol, f"{name}: max abs diff {err}"

    # 1. Small NCHW case (the module's canonical usage).
    _run_case("nchw_small", 2, 4, 16, 16)
    # 2. MXU excitation path, odd batch (cdiv-padded grid), HW=49 < 128.
    #    Looser tolerance: both kernel and reference run the channel matmuls
    #    at the TPU's default (bf16-multiply, f32-accumulate) precision.
    _run_case("nchw_mxu", 5, 256, 7, 7, atol=2e-2)
    # 3. Channels-last (NHWC) lane-dense presentation.
    _run_case("nhwc", 3, 16, 5, 5, channels_last=True)
    # 4. Two-pass HW-tiled fallback (forced via a tiny block budget).
    _run_case("nchw_hw_tiled", 2, 8, 16, 16, block_budget_bytes=4096)

    print("KERNEL_OK")
</pallas_src>

<mosaic_0001>
module attributes {stable_mosaic.version = 11 : i64} {
  func.func @se_kernel(%arg0: i32, %arg1: memref<1x4x256xf32, #tpu.memory_space<vmem>>, %arg2: memref<4x1xf32, #tpu.memory_space<vmem>>, %arg3: memref<1x1xf32, #tpu.memory_space<vmem>>, %arg4: memref<1x4xf32, #tpu.memory_space<vmem>>, %arg5: memref<1x4xf32, #tpu.memory_space<vmem>>, %arg6: memref<1x4x256xf32, #tpu.memory_space<vmem>>) attributes {dimension_semantics = [#tpu.dimension_semantics<parallel>], iteration_bounds = array<i64: 2>, scalar_prefetch = 0 : i64, scratch_operands = 0 : i64, tpu.core_type = #tpu.core_type<tc>, window_params = [{transform_indices = @transform_0, window_bounds = array<i64: 1, 4, 256>}, {pipeline_mode = #tpu.pipeline_mode<synchronous>, transform_indices = @transform_1, window_bounds = array<i64: 4, 1>}, {pipeline_mode = #tpu.pipeline_mode<synchronous>, transform_indices = @transform_2, window_bounds = array<i64: 1, 1>}, {pipeline_mode = #tpu.pipeline_mode<synchronous>, transform_indices = @transform_3, window_bounds = array<i64: 1, 4>}, {pipeline_mode = #tpu.pipeline_mode<synchronous>, transform_indices = @transform_4, window_bounds = array<i64: 1, 4>}, {transform_indices = @transform_5, window_bounds = array<i64: 1, 4, 256>}]} {
    %c0 = arith.constant 0 : index
    %c0_0 = arith.constant 0 : index
    %c0_1 = arith.constant 0 : index
    %0 = vector.load %arg1[%c0, %c0_0, %c0_1] : memref<1x4x256xf32, #tpu.memory_space<vmem>>, vector<1x4x256xf32>
    %cst = arith.constant dense<0.000000e+00> : vector<1x4xf32>
    %1 = vector.multi_reduction <add>, %0, %cst [2] : vector<1x4x256xf32> to vector<1x4xf32>
    %cst_2 = arith.constant 3.906250e-03 : f32
    %2 = vector.broadcast %cst_2 : f32 to vector<1x4xf32>
    %3 = arith.mulf %1, %2 : vector<1x4xf32>
    %c0_3 = arith.constant 0 : index
    %c0_4 = arith.constant 0 : index
    %4 = vector.load %arg2[%c0_3, %c0_4] : memref<4x1xf32, #tpu.memory_space<vmem>>, vector<4x1xf32>
    %c0_5 = arith.constant 0 : index
    %c0_6 = arith.constant 0 : index
    %5 = vector.load %arg3[%c0_5, %c0_6] : memref<1x1xf32, #tpu.memory_space<vmem>>, vector<1x1xf32>
    %c0_7 = arith.constant 0 : index
    %c0_8 = arith.constant 0 : index
    %6 = vector.load %arg4[%c0_7, %c0_8] : memref<1x4xf32, #tpu.memory_space<vmem>>, vector<1x4xf32>
    %c0_9 = arith.constant 0 : index
    %c0_10 = arith.constant 0 : index
    %7 = vector.load %arg5[%c0_9, %c0_10] : memref<1x4xf32, #tpu.memory_space<vmem>>, vector<1x4xf32>
    %8 = vector.shape_cast %3 : vector<1x4xf32> to vector<1x4x1xf32>
    %9 = vector.shape_cast %4 : vector<4x1xf32> to vector<1x4x1xf32>
    %10 = arith.mulf %8, %9 : vector<1x4x1xf32>
    %cst_11 = arith.constant dense<0.000000e+00> : vector<1x1xf32>
    %11 = vector.multi_reduction <add>, %10, %cst_11 [1] : vector<1x4x1xf32> to vector<1x1xf32>
    %12 = arith.addf %11, %5 : vector<1x1xf32>
    %cst_12 = arith.constant 0.000000e+00 : f32
    %13 = vector.broadcast %cst_12 : f32 to vector<1x1xf32>
    %14 = arith.maximumf %12, %13 : vector<1x1xf32>
    %15 = vector.shape_cast %14 : vector<1x1xf32> to vector<1x1x1xf32>
    %16 = vector.shape_cast %6 : vector<1x4xf32> to vector<1x1x4xf32>
    %17 = vector.broadcast %15 : vector<1x1x1xf32> to vector<1x1x4xf32>
    %18 = arith.mulf %17, %16 : vector<1x1x4xf32>
    %cst_13 = arith.constant dense<0.000000e+00> : vector<1x4xf32>
    %19 = vector.multi_reduction <add>, %18, %cst_13 [1] : vector<1x1x4xf32> to vector<1x4xf32>
    %20 = arith.addf %19, %7 : vector<1x4xf32>
    %21 = arith.negf %20 : vector<1x4xf32>
    %22 = math.exp %21 : vector<1x4xf32>
    %cst_14 = arith.constant 1.000000e+00 : f32
    %23 = vector.broadcast %cst_14 : f32 to vector<1x4xf32>
    %24 = arith.addf %23, %22 : vector<1x4xf32>
    %25 = arith.divf %23, %24 : vector<1x4xf32>
    %26 = vector.shape_cast %25 : vector<1x4xf32> to vector<1x4x1xf32>
    %27 = vector.broadcast %26 : vector<1x4x1xf32> to vector<1x4x256xf32>
    %28 = arith.mulf %0, %27 : vector<1x4x256xf32>
    %c0_15 = arith.constant 0 : index
    %c0_16 = arith.constant 0 : index
    %c0_17 = arith.constant 0 : index
    %29 = vector.load %arg6[%c0_15, %c0_16, %c0_17] : memref<1x4x256xf32, #tpu.memory_space<vmem>>, vector<1x4x256xf32>
    tpu.vector_store %arg6[%c0_15, %c0_16, %c0_17], %28 {strides = array<i32>} : memref<1x4x256xf32, #tpu.memory_space<vmem>>, vector<1x4x256xf32>,
    return
  }
  func.func @transform_0(%arg0: i32) -> (i32, i32, i32) {
    %c0_i32 = arith.constant 0 : i32
    %c0_i32_0 = arith.constant 0 : i32
    %c0_i32_1 = arith.constant 0 : i32
    return %arg0, %c0_i32, %c0_i32_0 : i32, i32, i32
  }
  func.func @transform_1(%arg0: i32) -> (i32, i32) {
    %c0_i32 = arith.constant 0 : i32
    %c0_i32_0 = arith.constant 0 : i32
    %c0_i32_1 = arith.constant 0 : i32
    return %c0_i32, %c0_i32_0 : i32, i32
  }
  func.func @transform_2(%arg0: i32) -> (i32, i32) {
    %c0_i32 = arith.constant 0 : i32
    %c0_i32_0 = arith.constant 0 : i32
    %c0_i32_1 = arith.constant 0 : i32
    return %c0_i32, %c0_i32_0 : i32, i32
  }
  func.func @transform_3(%arg0: i32) -> (i32, i32) {
    %c0_i32 = arith.constant 0 : i32
    %c0_i32_0 = arith.constant 0 : i32
    %c0_i32_1 = arith.constant 0 : i32
    return %c0_i32, %c0_i32_0 : i32, i32
  }
  func.func @transform_4(%arg0: i32) -> (i32, i32) {
    %c0_i32 = arith.constant 0 : i32
    %c0_i32_0 = arith.constant 0 : i32
    %c0_i32_1 = arith.constant 0 : i32
    return %c0_i32, %c0_i32_0 : i32, i32
  }
  func.func @transform_5(%arg0: i32) -> (i32, i32, i32) {
    %c0_i32 = arith.constant 0 : i32
    %c0_i32_0 = arith.constant 0 : i32
    %c0_i32_1 = arith.constant 0 : i32
    return %arg0, %c0_i32, %c0_i32_0 : i32, i32, i32
  }
}

</mosaic_0001>

<llo_original>
// kernel: tpu_custom_call.1
$region0: #{tpu_custom_call.1}
  #allocation0 [shape = 'u32[]', space=smem, size = 0x4, offset = 0x4, fixed_abs, tag = 'smem constant byte address 0x4 - core index']
  #allocation1 [shape = 'u32[144,128]{1,0:T(1,128)}', space=vmem, size = 0x12000, scoped, tag = 'internal scratch']
  #allocation2 [shape = 'f32[1,1]{1,0:T(1,128)S(1)}', space=vmem, size = 0x200, scoped, tag = 'scoped memory for tpu_custom_call.1']
  %s0 = inlined_call_operand.hbm [shape: f32[2,4,256], index: 0, kind: input, shape index: {}]
  %s1 = inlined_call_operand.vmem [shape: f32[4,1], index: 1, kind: input, shape index: {}]
  %s2 = inlined_call_operand.<no memory space> [shape: f32[1,1], index: 2, kind: input, shape index: {}]
  %s3 = inlined_call_operand.vmem [shape: f32[1,4], index: 3, kind: input, shape index: {}]
  %s4 = inlined_call_operand.vmem [shape: f32[1,4], index: 4, kind: input, shape index: {}]
  %s5 = inlined_call_operand.hbm [shape: f32[2,4,256], index: 5, kind: output, shape index: {}]
  %s6 = sld [smem:[#allocation0]]
  $region57: #{tpu_custom_call.1} parent=0
    _
  %s8 = ssub.s32 1, %s6
  %s9 = scalar_select 0, %s8, %s6
  %v10 = vstv %s2
  %11 = vst [vmem:[#allocation2] sm:$0x1] %v10
  $region1: #{tpu_custom_call.1} parent=0
    #allocation3 [shape = 'u8[8192]{0}', space=vmem, size = 0x2000, scoped, tag = 'input window, operand 0']
    #allocation4 [shape = 's32[2]{0}', space=sflag, size = 0x8, scoped, tag = 'scoped memory for tpu_custom_call.1']
    #allocation5 [shape = 's32[2]{0}', space=sflag, size = 0x8, scoped, tag = 'scoped memory for tpu_custom_call.1']
    #allocation6 [shape = 'u8[8192]{0}', space=vmem, size = 0x2000, scoped, tag = 'output window, operand 0']
    %12 = vsyncpa [#allocation4], 0
    %s13 = scalar_lea.sflag [#allocation4], 1
    %14 = vsyncpa %s13, 0
    %15 = vsyncpa [#allocation5], 0
    %s16 = scalar_lea.sflag [#allocation5], 1
    %17 = vsyncpa %s16, 0
    loop: start=0, step=1, limit=4
    $region2: #{tpu_custom_call.1} parent=1 // loop_pre_header
      _
    $region3: #{tpu_custom_call.1} parent=1 // loop_header
      %s19 = sphi 0, %s23
      %p20 = scmp.ge.s32.totalorder %s19, 4
      %s29 = sphi 0, %s31
      %s32 = sphi 0, %s29
      %s33 = sphi 0, %s32
      %s49 = sphi 0, %s33
      %s53 = sphi 0, %s53
      %s55 = sphi 0, %s53
      %s56 = sphi 0, %s55
      %s70 = sphi 0, %s56
      %s74 = sphi 0, %s74
      %s76 = sphi 0, %s74
      %s77 = sphi 0, %s76
      %s91 = sphi 0, %s77
      %s95 = sphi 0, %s95
      %s97 = sphi 0, %s95
      %s98 = sphi 0, %s97
      %s112 = sphi 0, %s98
      %s116 = sphi 0, %s116
      %s118 = sphi 0, %s116
      %s119 = sphi 0, %s118
      %s133 = sphi 0, %s119
      %s139 = sphi 0, %s141
      %s142 = sphi 0, %s139
      %s143 = sphi 0, %s142
      %s159 = sphi 0, %s143
    $region4: #{tpu_custom_call.1} parent=1 // loop_header_branch
      %22 = sbr.rel (%p20) target = $region8
    $region5: #{tpu_custom_call.1} parent=1 // loop_body
      %s24 = ssub.s32 %s19, 1
      %s25 = ssub.s32 %s19, 2
      %s26 = sadd.s32 %s19, 1
      %s27 = ssub.s32 %s19, %s26
      %p28 = scmp.eq.s32.totalorder %s27, 0
      %s30 = sadd.s32 %s29, 1
      %s31 = scalar_select %p28, %s29, %s30
      %p34 = pneg %p28
      %p35 = scmp.eq.s32.totalorder %s19, 1
      %p36 = por %p34, %p35
      %p37 = scmp.ne.s32.totalorder %s29, %s32
      %p38 = scmp.eq.s32.totalorder %s19, 0
      %p39 = por %p37, %p38
      %p40 = scmp.ne.s32.totalorder %s29, %s32
      %p41 = scmp.eq.s32.totalorder %s24, 1
      %p42 = por %p40, %p41
      %p43 = scmp.ne.s32.totalorder %s32, %s33
      %p44 = scmp.eq.s32.totalorder %s24, 0
      %p45 = por %p43, %p44
      %p46 = scmp.ne.s32.totalorder %s32, %s33
      %p47 = scmp.eq.s32.totalorder %s25, 1
      %p48 = por %p46, %p47
      %p50 = scmp.ne.s32.totalorder %s33, %s49
      %p51 = scmp.eq.s32.totalorder %s25, 0
      %p52 = por %p50, %p51
      %s54 = sadd.s32 %s53, 1
      %p57 = scmp.eq.s32.totalorder %s19, 1
      %p58 = scmp.ne.s32.totalorder %s53, %s55
      %p59 = scmp.eq.s32.totalorder %s19, 0
      %p60 = por %p58, %p59
      %p61 = scmp.ne.s32.totalorder %s53, %s55
      %p62 = scmp.eq.s32.totalorder %s24, 1
      %p63 = por %p61, %p62
      %p64 = scmp.ne.s32.totalorder %s55, %s56
      %p65 = scmp.eq.s32.totalorder %s24, 0
      %p66 = por %p64, %p65
      %p67 = scmp.ne.s32.totalorder %s55, %s56
      %p68 = scmp.eq.s32.totalorder %s25, 1
      %p69 = por %p67, %p68
      %p71 = scmp.ne.s32.totalorder %s56, %s70
      %p72 = scmp.eq.s32.totalorder %s25, 0
      %p73 = por %p71, %p72
      %s75 = sadd.s32 %s74, 1
      %p78 = scmp.eq.s32.totalorder %s19, 1
      %p79 = scmp.ne.s32.totalorder %s74, %s76
      %p80 = scmp.eq.s32.totalorder %s19, 0
      %p81 = por %p79, %p80
      %p82 = scmp.ne.s32.totalorder %s74, %s76
      %p83 = scmp.eq.s32.totalorder %s24, 1
      %p84 = por %p82, %p83
      %p85 = scmp.ne.s32.totalorder %s76, %s77
      %p86 = scmp.eq.s32.totalorder %s24, 0
      %p87 = por %p85, %p86
      %p88 = scmp.ne.s32.totalorder %s76, %s77
      %p89 = scmp.eq.s32.totalorder %s25, 1
      %p90 = por %p88, %p89
      %p92 = scmp.ne.s32.totalorder %s77, %s91
      %p93 = scmp.eq.s32.totalorder %s25, 0
      %p94 = por %p92, %p93
      %s96 = sadd.s32 %s95, 1
      %p99 = scmp.eq.s32.totalorder %s19, 1
      %p100 = scmp.ne.s32.totalorder %s95, %s97
      %p101 = scmp.eq.s32.totalorder %s19, 0
      %p102 = por %p100, %p101
      %p103 = scmp.ne.s32.totalorder %s95, %s97
      %p104 = scmp.eq.s32.totalorder %s24, 1
      %p105 = por %p103, %p104
      %p106 = scmp.ne.s32.totalorder %s97, %s98
      %p107 = scmp.eq.s32.totalorder %s24, 0
      %p108 = por %p106, %p107
      %p109 = scmp.ne.s32.totalorder %s97, %s98
      %p110 = scmp.eq.s32.totalorder %s25, 1
      %p111 = por %p109, %p110
      %p113 = scmp.ne.s32.totalorder %s98, %s112
      %p114 = scmp.eq.s32.totalorder %s25, 0
      %p115 = por %p113, %p114
      %s117 = sadd.s32 %s116, 1
      %p120 = scmp.eq.s32.totalorder %s19, 1
      %p121 = scmp.ne.s32.totalorder %s116, %s118
      %p122 = scmp.eq.s32.totalorder %s19, 0
      %p123 = por %p121, %p122
      %p124 = scmp.ne.s32.totalorder %s116, %s118
      %p125 = scmp.eq.s32.totalorder %s24, 1
      %p126 = por %p124, %p125
      %p127 = scmp.ne.s32.totalorder %s118, %s119
      %p128 = scmp.eq.s32.totalorder %s24, 0
      %p129 = por %p127, %p128
      %p130 = scmp.ne.s32.totalorder %s118, %s119
      %p131 = scmp.eq.s32.totalorder %s25, 1
      %p132 = por %p130, %p131
      %p134 = scmp.ne.s32.totalorder %s119, %s133
      %p135 = scmp.eq.s32.totalorder %s25, 0
      %p136 = por %p134, %p135
      %s137 = ssub.s32 %s19, %s26
      %p138 = scmp.eq.s32.totalorder %s137, 0
      %s140 = sadd.s32 %s139, 1
      %s141 = scalar_select %p138, %s139, %s140
      %p144 = pneg %p138
      %p145 = scmp.eq.s32.totalorder %s19, 1
      %p146 = por %p144, %p145
      %p147 = scmp.ne.s32.totalorder %s139, %s142
      %p148 = scmp.eq.s32.totalorder %s19, 0
      %p149 = por %p147, %p148
      %p150 = scmp.ne.s32.totalorder %s139, %s142
      %p151 = scmp.eq.s32.totalorder %s24, 1
      %p152 = por %p150, %p151
      %p153 = scmp.ne.s32.totalorder %s142, %s143
      %p154 = scmp.eq.s32.totalorder %s24, 0
      %p155 = por %p153, %p154
      %p156 = scmp.ne.s32.totalorder %s142, %s143
      %p157 = scmp.eq.s32.totalorder %s25, 1
      %p158 = por %p156, %p157
      %p160 = scmp.ne.s32.totalorder %s143, %s159
      %p161 = scmp.eq.s32.totalorder %s25, 0
      %p162 = por %p160, %p161
      %p163 = scmp.le.s32.totalorder 1, %s19
      %p164 = scmp.lt.s32.totalorder %s19, 3
      %p165 = pnand %p163, %p164
      %p166 = pneg %p165
      // Predicated region
      $region9: #{tpu_custom_call.1} parent=5 // pred_check
        _
      $region10: #{tpu_custom_call.1} parent=5 // pred_check_branch
        %168 = sbr.rel (%p165) target = $region12
      $region11: #{tpu_custom_call.1} parent=5 // pred_region
        %s169 = ssub.s32 %s19, 1
        // Predicated region
        $region13: #{tpu_custom_call.1} parent=11 // pred_check
          %p170 = pneg %p66
        $region14: #{tpu_custom_call.1} parent=11 // pred_check_branch
          %172 = sbr.rel (%p170) target = $region16
        $region15: #{tpu_custom_call.1} parent=11 // pred_region
          _
        $region16: #{tpu_custom_call.1} parent=11 // pred_fallthru
          _
        // Predicated region
        $region17: #{tpu_custom_call.1} parent=11 // pred_check
          %p173 = pneg %p87
        $region18: #{tpu_custom_call.1} parent=11 // pred_check_branch
          %175 = sbr.rel (%p173) target = $region20
        $region19: #{tpu_custom_call.1} parent=11 // pred_region
          _
        $region20: #{tpu_custom_call.1} parent=11 // pred_fallthru
          _
        // Predicated region
        $region21: #{tpu_custom_call.1} parent=11 // pred_check
          %p176 = pneg %p108
        $region22: #{tpu_custom_call.1} parent=11 // pred_check_branch
          %178 = sbr.rel (%p176) target = $region24
        $region23: #{tpu_custom_call.1} parent=11 // pred_region
          _
        $region24: #{tpu_custom_call.1} parent=11 // pred_fallthru
          _
        // Predicated region
        $region25: #{tpu_custom_call.1} parent=11 // pred_check
          %p179 = pneg %p129
        $region26: #{tpu_custom_call.1} parent=11 // pred_check_branch
          %181 = sbr.rel (%p179) target = $region28
        $region27: #{tpu_custom_call.1} parent=11 // pred_region
          _
        $region28: #{tpu_custom_call.1} parent=11 // pred_fallthru
          _
      $region12: #{tpu_custom_call.1} parent=5 // pred_fallthru
        _
      %p182 = scmp.lt.s32.totalorder %s19, 2
      // Predicated region
      $region29: #{tpu_custom_call.1} parent=5 // pred_check
        %p183 = pneg %p182
      $region30: #{tpu_custom_call.1} parent=5 // pred_check_branch
        %185 = sbr.rel (%p183) target = $region32
      $region31: #{tpu_custom_call.1} parent=5 // pred_region
        // Predicated region
        $region33: #{tpu_custom_call.1} parent=31 // pred_check
          %p186 = pneg %p39
        $region34: #{tpu_custom_call.1} parent=31 // pred_check_branch
          %188 = sbr.rel (%p186) target = $region36
        $region35: #{tpu_custom_call.1} parent=31 // pred_region
          %s189 = sand.u32 %s29, 1
          %s190 = scalar_lea.sflag [#allocation4], %s189
          %s191 = sand.u32 %s29, 1
          %s192 = smul.addr %s191, 8
          %s193 = scalar_lea.vmem [#allocation3], %s192
          %s195 = ssub.s32 128, 128
          %196 = vsyncadd %s190, %s195
          %s197 = smul.addr %s19, 2
          %s198 = smul.addr %s197, 64
          %s199 = scalar_lea.hbm %s0, %s198
          %s201 = sshll.u32 %s193, 4
          %s202 = int_to_ptr.vmem [resolvable:$true] %s201
          %204 = dma.hbm_to_vmem [thread:$0]  %s199, 128, %s202, %s190
        $region36: #{tpu_custom_call.1} parent=31 // pred_fallthru
          _
      $region32: #{tpu_custom_call.1} parent=5 // pred_fallthru
        _
      %p205 = scmp.le.s32.totalorder 1, %s19
      %p206 = scmp.lt.s32.totalorder %s19, 3
      %p207 = pnand %p205, %p206
      %p208 = pneg %p207
      // Predicated region
      $region37: #{tpu_custom_call.1} parent=5 // pred_check
        _
      $region38: #{tpu_custom_call.1} parent=5 // pred_check_branch
        %210 = sbr.rel (%p207) target = $region40
      $region39: #{tpu_custom_call.1} parent=5 // pred_region
        %s211 = ssub.s32 %s19, 1
        %s212 = sand.u32 %s32, 1
        %s213 = scalar_lea.sflag [#allocation4], %s212
        %s214 = sand.u32 %s32, 1
        %s215 = smul.addr %s214, 8
        %s216 = scalar_lea.vmem [#allocation3], %s215
        // Predicated region
        $region41: #{tpu_custom_call.1} parent=39 // pred_check
          %p217 = pneg %p45
        $region42: #{tpu_custom_call.1} parent=39 // pred_check_branch
          %219 = sbr.rel (%p217) target = $region44
        $region43: #{tpu_custom_call.1} parent=39 // pred_region
          %220 = dma.done %s213, 128
        $region44: #{tpu_custom_call.1} parent=39 // pred_fallthru
          _
        %s221 = sand.u32 %s32, 1
        %s222 = scalar_lea.sflag [#allocation4], %s221
        %s223 = sand.u32 %s32, 1
        %s224 = smul.addr %s223, 8
        %s225 = scalar_lea.vmem [#allocation3], %s224
        %p226 = pneg %p45
        %p227 = pneg %p42
        %p228 = pneg %p66
        %p229 = pneg %p63
        %p230 = pneg %p87
        %p231 = pneg %p84
        %p232 = pneg %p108
        %p233 = pneg %p105
        %p234 = pneg %p129
        %p235 = pneg %p126
        %p236 = pneg %p155
        %p237 = pneg %p152
        %s238 = sand.u32 %s142, 1
        %s239 = scalar_lea.sflag [#allocation5], %s238
        %s240 = sand.u32 %s142, 1
        %s241 = smul.addr %s240, 8
        %s242 = scalar_lea.vmem [#allocation6], %s241
        %v243 = vld [vmem:[%s216] sm:$0xff]
        %v245 = vcombine.high %v243, %v243
        %vm247 = vcmask 1043456
        %v248 = vsel %vm247, %v243, 0.0
        %v249 = vsel %vm247, %v245, 0.0
        %v250 = vadd.f32 %v248, %v249
        %251 = vadd.xlane.f32.xlu0 %v250
        %v252 = vpop.xlane.xlu0 %251
        %v253 = vmul.f32 %v252, 0.00390625
        %v254 = vld [vmem:[%s1] sm:$0xf]
        %v255 = vld [vmem:[#allocation2] sm:$0x1]
        %v256 = vld [vmem:[%s3] sm:$0x1]
        %v257 = vld [vmem:[%s4] sm:$0x1]
        %v258 = vmul.f32 %v253, %v254
        %vm259 = vcmask 3072
        %v260 = vsel %vm259, %v258, 0.0
        %v261 = vrot.slane %v260, 4
        %v262 = vadd.f32 %v260, %v261
        %v263 = vrot.slane %v262, 2
        %v264 = vadd.f32 %v262, %v263
        %v265 = vrot.slane %v264, 1
        %v266 = vadd.f32 %v264, %v265
        %v267 = vadd.f32 %v266, %v255
        %v268 = vmax.f32 %v267, 0.0
        %270 = vset.pattern.permute.xlu0 0
        %271 = vperm.xlu0 %270, %v268
        %v272 = vpop.permute.xlu0 %271
        %v274 = vmul.f32 %v272, %v256
        %v275 = vadd.f32 %v274, 0.0
        %v276 = vadd.f32 %v275, %v257
        %v277 = vxor.u32 %v276, 2147483648
        %v278 = vmul.f32 %v277, 1.442695
        %v279 = vpow.pop %v278
        %v280 = vadd.f32 %v279, 1.0
        %v281 = vrcp.pop %v280
        %v282 = vmul.f32 1.0, %v281
        %v283 = vlaneseq
        %v284 = vshrl.u32 %v283, 7
        %v285 = vsub.s32 0, %v284
        %v286 = vrot.slane %v282, %v285
        %288 = vbcast.lane.b32.xlu0 %v286, 256
        %v289 = vpop.permute.xlu0 %288
        %v292 = vunpack.c.l.s4 839922192
        %v293 = vunpack.c.0.s8 %v292
        %v294 = vlaneseq
        %v295 = vshrl.u32 %v294, 7
        %v296 = vsub.s32 %v293, %v295
        %v297 = vrot.slane %v289, %v296
        %v299 = vmul.f32 %v243, %v297
        %300 = vst [vmem:[%s242] sm:$0xff] %v299
        %s301 = sand.u32 %s142, 1
        %s302 = scalar_lea.sflag [#allocation5], %s301
        %s303 = sand.u32 %s142, 1
        %s304 = smul.addr %s303, 8
        %s305 = scalar_lea.vmem [#allocation6], %s304
        // Predicated region
        $region45: #{tpu_custom_call.1} parent=39 // pred_check
          %p306 = pneg %p152
        $region46: #{tpu_custom_call.1} parent=39 // pred_check_branch
          %308 = sbr.rel (%p306) target = $region48
        $region47: #{tpu_custom_call.1} parent=39 // pred_region
          %s310 = ssub.s32 128, 128
          %311 = vsyncadd %s302, %s310
          %s312 = smul.addr %s24, 2
          %s313 = smul.addr %s312, 64
          %s314 = scalar_lea.hbm %s5, %s313
          %s316 = sshll.u32 %s305, 4
          %s317 = int_to_ptr.vmem [resolvable:$true] %s316
          %319 = dma.vmem_to_hbm [thread:$0]  %s317, 128, %s314, %s302
        $region48: #{tpu_custom_call.1} parent=39 // pred_fallthru
          _
      $region40: #{tpu_custom_call.1} parent=5 // pred_fallthru
        _
      %p320 = scmp.le.s32.totalorder 2, %s19
      // Predicated region
      $region49: #{tpu_custom_call.1} parent=5 // pred_check
        %p321 = pneg %p320
      $region50: #{tpu_custom_call.1} parent=5 // pred_check_branch
        %323 = sbr.rel (%p321) target = $region52
      $region51: #{tpu_custom_call.1} parent=5 // pred_region
        %s324 = ssub.s32 %s19, 2
        // Predicated region
        $region53: #{tpu_custom_call.1} parent=51 // pred_check
          %p325 = pneg %p158
        $region54: #{tpu_custom_call.1} parent=51 // pred_check_branch
          %327 = sbr.rel (%p325) target = $region56
        $region55: #{tpu_custom_call.1} parent=51 // pred_region
          %s328 = sand.u32 %s143, 1
          %s329 = scalar_lea.sflag [#allocation5], %s328
          %s330 = sand.u32 %s143, 1
          %s331 = smul.addr %s330, 8
          %s332 = scalar_lea.vmem [#allocation6], %s331
          %333 = dma.done %s329, 128
        $region56: #{tpu_custom_call.1} parent=51 // pred_fallthru
          _
      $region52: #{tpu_custom_call.1} parent=5 // pred_fallthru
        _
    $region6: #{tpu_custom_call.1} parent=1 // loop_footer
      %s23 = sadd.s32 1, %s19
    $region7: #{tpu_custom_call.1} parent=1 // loop_footer_branch
      %18 = sbr.rel target = $region3
    $region8: #{tpu_custom_call.1} parent=1 // loop_exit
      _
    %334 = vsyncpa [#allocation4], 1
    %s335 = scalar_lea.sflag [#allocation4], 1
    %336 = vsyncpa %s335, 1
    %337 = vsyncpa [#allocation5], 1
    %s338 = scalar_lea.sflag [#allocation5], 1
    %339 = vsyncpa %s338, 1

</llo_original>
